<compile_context>
chip_gen: v7x
topology: tpu7x:2x2x1
jax: 0.10.0
libtpu: 0.0.40
codegen_flags: <defaults>
</compile_context>

<pallas_src>
import jax
import jax.numpy as jnp
import numpy as np
from jax.experimental import pallas as pl
from jax.experimental.pallas import tpu as pltpu

_LANES = 128           # TPU lane width -> lane-dense (unmasked) stores
_SUBLANES = 8          # f32 sublane granularity
_TILE_BYTES = 2 << 20  # ~2 MiB per f32 input block; double-buffered in+out
                       # (~8 MiB live) fits every generation's scoped VMEM


def _label_cast_kernel(x_ref, o_ref):
    # np.array(label).astype(int): truncate-toward-zero float -> int cast.
    # (int32 on device; host side widens to platform int.)
    o_ref[...] = x_ref[...].astype(jnp.int32)


def _round_up(x, m):
    return ((x + m - 1) // m) * m


@jax.jit
def parse_labels(label_vals: jax.Array) -> jax.Array:
    """Cast the parsed (float-valued) label table to int32 on-device.

    label_vals: (N, L) float32 array of label tokens (one row per text line).
    returns:    (R, 128) int32 lane-dense view; the first N*L flat elements
                are the cast labels (callers slice/reshape on the host).
    """
    N, L = label_vals.shape
    total = N * L

    # Lane-dense flat view: rows of 128 lanes; pad only the (<1 tile) tail.
    rows_needed = pl.cdiv(max(total, 1), _LANES)

    # Row tile: <= ~_TILE_BYTES of f32 per input block, multiple of 8 sublanes,
    # and <= half the rows (rounded up) so v7x's two TensorCores both get work.
    budget_rows = max(_SUBLANES,
                      (_TILE_BYTES // (_LANES * 4)) // _SUBLANES * _SUBLANES)
    half_rows = _round_up(pl.cdiv(rows_needed, 2), _SUBLANES)
    tile_rows = max(_SUBLANES, min(budget_rows, half_rows))

    rows = _round_up(rows_needed, tile_rows)
    padded_total = rows * _LANES

    flat = label_vals.reshape(-1)
    if padded_total != total:
        # Tail-only pad (at most tile_rows*128-1 elems).  For huge tables this
        # is still one extra HBM pass; could be folded into the kernel's input
        # DMA via allow_input_fusion, omitted here for lowering robustness.
        flat = jnp.pad(flat, (0, padded_total - total))
    x = flat.reshape(rows, _LANES)

    out = pl.pallas_call(
        _label_cast_kernel,
        out_shape=jax.ShapeDtypeStruct((rows, _LANES), jnp.int32),
        grid=(rows // tile_rows,),
        in_specs=[pl.BlockSpec((tile_rows, _LANES), lambda i: (i, 0))],
        out_specs=pl.BlockSpec((tile_rows, _LANES), lambda i: (i, 0)),
        compiler_params=pltpu.CompilerParams(
            dimension_semantics=("parallel",)),
    )(x)
    # No device-side un-pad slice: callers slice the flat view on the host.
    return out


def read_txt_forward(img_names, label_vals):
    """Mirror of ReadTxt.forward on pre-parsed data.

    img_names:  list[str] of length N (the first whitespace token per line).
    label_vals: (N, L) float32 array (remaining tokens per line, as numbers).
    Returns (imgs, labels, imgs_lab) just like the PyTorch module.
    """
    N, L = label_vals.shape
    dev = parse_labels(label_vals)

    # One bulk D2H transfer; un-pad with a free numpy view + reshape on host.
    host_flat = np.asarray(jax.device_get(dev)).reshape(-1)[: N * L]
    host = host_flat.reshape(N, L).astype(int)  # widen to platform int

    imgs = list(img_names)
    labels = [host[i] for i in range(N)]        # per-line numpy arrays
    imgs_lab = list(zip(imgs, labels))
    return imgs, labels, imgs_lab


if __name__ == "__main__":
    key = jax.random.PRNGKey(0)
    N_LINES = 8      # number of "text lines"
    N_LABELS = 16    # label columns per line

    # Synthetic "parsed file": filenames + float-valued label tokens.
    img_names = [f"img_{i:03d}.jpg" for i in range(N_LINES)]
    label_vals = jax.random.uniform(
        key, (N_LINES, N_LABELS), dtype=jnp.float32, minval=0.0, maxval=10.0
    )

    # Run the kernel once and block on the result.
    dev_out = parse_labels(label_vals)
    jax.block_until_ready(dev_out)

    imgs, labels, imgs_lab = read_txt_forward(img_names, label_vals)

    # Sanity check against the astype(int) reference.
    ref = np.asarray(label_vals).astype(int)
    got = np.stack(labels)
    assert len(imgs) == N_LINES and len(imgs_lab) == N_LINES
    assert imgs_lab[0][0] == img_names[0]
    np.testing.assert_array_equal(got, ref)

    dev_valid = (
        np.asarray(dev_out).reshape(-1)[: N_LINES * N_LABELS]
        .reshape(N_LINES, N_LABELS)
    )
    np.testing.assert_array_equal(dev_valid, ref.astype(np.int32))

    print("KERNEL_OK")
</pallas_src>

<mosaic_0001>
module attributes {stable_mosaic.version = 11 : i64} {
  func.func @_label_cast_kernel(%arg0: i32, %arg1: memref<8x128xf32, #tpu.memory_space<vmem>>, %arg2: memref<8x128xi32, #tpu.memory_space<vmem>>) attributes {dimension_semantics = [#tpu.dimension_semantics<parallel>], iteration_bounds = array<i64: 1>, scalar_prefetch = 0 : i64, scratch_operands = 0 : i64, tpu.core_type = #tpu.core_type<tc>, window_params = [{transform_indices = @transform_0, window_bounds = array<i64: 8, 128>}, {transform_indices = @transform_1, window_bounds = array<i64: 8, 128>}]} {
    %c0 = arith.constant 0 : index
    %c0_0 = arith.constant 0 : index
    %0 = vector.load %arg1[%c0, %c0_0] : memref<8x128xf32, #tpu.memory_space<vmem>>, vector<8x128xf32>
    %1 = arith.fptosi %0 : vector<8x128xf32> to vector<8x128xi32>
    %c0_1 = arith.constant 0 : index
    %c0_2 = arith.constant 0 : index
    %2 = vector.load %arg2[%c0_1, %c0_2] : memref<8x128xi32, #tpu.memory_space<vmem>>, vector<8x128xi32>
    tpu.vector_store %arg2[%c0_1, %c0_2], %1 {strides = array<i32>} : memref<8x128xi32, #tpu.memory_space<vmem>>, vector<8x128xi32>,
    return
  }
  func.func @transform_0(%arg0: i32) -> (i32, i32) {
    %c0_i32 = arith.constant 0 : i32
    %c0_i32_0 = arith.constant 0 : i32
    return %arg0, %c0_i32 : i32, i32
  }
  func.func @transform_1(%arg0: i32) -> (i32, i32) {
    %c0_i32 = arith.constant 0 : i32
    %c0_i32_0 = arith.constant 0 : i32
    return %arg0, %c0_i32 : i32, i32
  }
}

</mosaic_0001>

<llo_original>
// kernel: parse_labels.1
$region0: #{parse_labels.1}
  #allocation0 [shape = 'u32[]', space=smem, size = 0x4, offset = 0x4, fixed_abs, tag = 'smem constant byte address 0x4 - core index']
  #allocation1 [shape = 'u32[144,128]{1,0:T(1,128)}', space=vmem, size = 0x12000, scoped, tag = 'internal scratch']
  %s0 = inlined_call_operand.vmem [shape: f32[8,128], index: 0, kind: input, shape index: {}]
  %s1 = inlined_call_operand.hbm [shape: s32[8,128], index: 1, kind: output, shape index: {}]
  %s2 = sld [smem:[#allocation0]]
  $region14: #{parse_labels.1} parent=0
    _
  %s4 = ssub.s32 1, %s2
  %s5 = scalar_select 0, %s4, %s2
  $region1: #{parse_labels.1} parent=0
    #allocation2 [shape = 'u8[4096]{0}', space=vmem, size = 0x1000, scoped, tag = 'output window, operand 0, single buffered']
    #allocation3 [shape = 's32[1]{0}', space=sflag, size = 0x4, scoped, tag = 'scoped memory for parse_labels.1']
    %6 = vsyncpa [#allocation3], 0
    // Predicated region
    $region2: #{parse_labels.1} parent=1 // pred_check
      _
    $region3: #{parse_labels.1} parent=1 // pred_check_branch
      %8 = sbr.rel (0) target = $region5
    $region4: #{parse_labels.1} parent=1 // pred_region
      _
    $region5: #{parse_labels.1} parent=1 // pred_fallthru
      _
    %v9 = vld [vmem:[%s0] sm:$0xff]
    %v10 = vcvt.f32.s32.to.zero.pseudo %v9
    %11 = vst [vmem:[#allocation2] sm:$0xff] %v10
    // Predicated region
    $region6: #{parse_labels.1} parent=1 // pred_check
      _
    $region7: #{parse_labels.1} parent=1 // pred_check_branch
      %13 = sbr.rel (0) target = $region9
    $region8: #{parse_labels.1} parent=1 // pred_region
      %s15 = ssub.s32 128, 128
      %16 = vsyncadd [#allocation3], %s15
      %s18 = sshll.u32 [#allocation2], 4
      %s19 = int_to_ptr.vmem [resolvable:$true] %s18
      %21 = dma.vmem_to_hbm [thread:$0]  %s19, 128, %s1, [#allocation3]
    $region9: #{parse_labels.1} parent=1 // pred_fallthru
      _
    // Predicated region
    $region10: #{parse_labels.1} parent=1 // pred_check
      _
    $region11: #{parse_labels.1} parent=1 // pred_check_branch
      %23 = sbr.rel (0) target = $region13
    $region12: #{parse_labels.1} parent=1 // pred_region
      %24 = dma.done [#allocation3], 128
    $region13: #{parse_labels.1} parent=1 // pred_fallthru
      _
    %25 = vsyncpa [#allocation3], 1

</llo_original>
